<compile_context>
chip_gen: v7x
topology: tpu7x:2x2x1
jax: 0.10.0
libtpu: 0.0.40
codegen_flags: <defaults>
</compile_context>

<pallas_src>
import jax
import jax.numpy as jnp
from jax.experimental import pallas as pl
from jax.experimental.pallas import tpu as pltpu


def _round_up(x, m):
    return ((x + m - 1) // m) * m


def gaussian_encoder_kernel(x_ref, w1_ref, b1_ref, w2_ref, b2_ref,
                            w3_ref, b3_ref, mean_ref, std_ref):
    # One (TB, Dp) batch tile: 3 MXU matmuls (bf16 operands, f32 accumulation),
    # VPU bias/ReLU in f32, EUP exp. Weights stay VMEM-resident across the grid.
    x = x_ref[...]                                                       # bf16 (TB, Dp)

    h1 = jnp.dot(x, w1_ref[...], preferred_element_type=jnp.float32) + b1_ref[...]
    h1 = jnp.maximum(h1, 0.0).astype(jnp.bfloat16)                       # ReLU in f32, cast for MXU

    h2 = jnp.dot(h1, w2_ref[...], preferred_element_type=jnp.float32) + b2_ref[...]
    h2 = jnp.maximum(h2, 0.0).astype(jnp.bfloat16)

    # Single fused final matmul; mean / logvar halves are each lane-padded to Mp
    # (multiple of 128) in the wrapper, so this split is vreg-aligned and free.
    out = jnp.dot(h2, w3_ref[...], preferred_element_type=jnp.float32) + b3_ref[...]
    Mp = mean_ref.shape[-1]
    mean_ref[...] = out[:, :Mp]
    std_ref[...] = jnp.exp(0.5 * out[:, Mp:])     # scale = sqrt(exp(logvar)), EUP exp


def gaussian_encoder(x, params, latent_dim, *, batch_tile=256):
    """x: (B, F1, F2). Returns (mean, std), each (B, latent_dim) f32, which
    parameterize Independent(Normal(mean, std), 1)."""
    w1, b1, w2, b2, w3, b3 = params
    B = x.shape[0]
    D, H = w1.shape
    M = latent_dim

    # Lane-aligned padded dims (exact under zero padding).
    Dp = _round_up(D, 128)
    Hp = _round_up(H, 128)
    Mp = _round_up(M, 128)

    # nn.Flatten(); bf16 input halves DMA bytes and feeds the MXU natively.
    x_flat = x.reshape(B, -1).astype(jnp.bfloat16)
    if Dp != D:
        x_flat = jnp.pad(x_flat, ((0, 0), (0, Dp - D)))

    # Batch tile: multiple of 8 (sublane), capped at 256 to fill MXU rows.
    TB = min(batch_tile, _round_up(B, 8))
    Bp = _round_up(B, TB)
    if Bp != B:
        x_flat = jnp.pad(x_flat, ((0, Bp - B), (0, 0)))

    def pad2(a, rows, cols):
        return jnp.pad(a, ((0, rows - a.shape[0]), (0, cols - a.shape[1])))

    # Trace-time (free) param repacking: bf16 weights, zero-pad to aligned dims,
    # final layer re-laid-out as [mean | pad | logvar | pad] so both halves are
    # lane-aligned inside the kernel.
    w1b = pad2(w1, Dp, Hp).astype(jnp.bfloat16)
    w2b = pad2(w2, Hp, Hp).astype(jnp.bfloat16)
    w3b = jnp.concatenate(
        [pad2(w3[:, :M], Hp, Mp), pad2(w3[:, M:], Hp, Mp)], axis=-1
    ).astype(jnp.bfloat16)                                                # (Hp, 2*Mp)
    b1f = pad2(b1, 1, Hp).astype(jnp.float32)
    b2f = pad2(b2, 1, Hp).astype(jnp.float32)
    b3f = jnp.concatenate(
        [pad2(b3[:, :M], 1, Mp), pad2(b3[:, M:], 1, Mp)], axis=-1
    ).astype(jnp.float32)                                                 # (1, 2*Mp)

    const = lambda i: (0, 0)                      # resident weights/biases

    cost = pl.CostEstimate(
        flops=2 * Bp * (Dp * Hp + Hp * Hp + Hp * 2 * Mp),
        transcendentals=Bp * Mp,
        bytes_accessed=(x_flat.size * 2
                        + (w1b.size + w2b.size + w3b.size) * 2
                        + (b1f.size + b2f.size + b3f.size) * 4
                        + 2 * Bp * Mp * 4),
    )

    mean_p, std_p = pl.pallas_call(
        gaussian_encoder_kernel,
        grid_spec=pltpu.PrefetchScalarGridSpec(
            num_scalar_prefetch=0,
            grid=(Bp // TB,),
            in_specs=[
                pl.BlockSpec((TB, Dp), lambda i: (i, 0)),   # streamed input tiles
                pl.BlockSpec((Dp, Hp), const),
                pl.BlockSpec((1, Hp), const),
                pl.BlockSpec((Hp, Hp), const),
                pl.BlockSpec((1, Hp), const),
                pl.BlockSpec((Hp, 2 * Mp), const),
                pl.BlockSpec((1, 2 * Mp), const),
            ],
            out_specs=[
                pl.BlockSpec((TB, Mp), lambda i: (i, 0)),
                pl.BlockSpec((TB, Mp), lambda i: (i, 0)),
            ],
        ),
        out_shape=(
            jax.ShapeDtypeStruct((Bp, Mp), jnp.float32),
            jax.ShapeDtypeStruct((Bp, Mp), jnp.float32),
        ),
        compiler_params=pltpu.CompilerParams(
            dimension_semantics=("parallel",),
            vmem_limit_bytes=32 * 1024 * 1024,    # explicit; safe within v7x's 64 MiB
        ),
        cost_estimate=cost,
    )(x_flat, w1b, b1f, w2b, b2f, w3b, b3f)

    # Strip batch / lane padding outside the kernel.
    return mean_p[:B, :M], std_p[:B, :M]


def init_params(key, in_dim, hidden, latent_dim):
    # Deterministic synthetic init (roughly torch's default uniform fan-in init).
    ks = jax.random.split(key, 6)

    def lin(kw, kb, fan_in, fan_out):
        bound = 1.0 / jnp.sqrt(fan_in)
        w = jax.random.uniform(kw, (fan_in, fan_out), jnp.float32, -bound, bound)
        b = jax.random.uniform(kb, (1, fan_out), jnp.float32, -bound, bound)
        return w, b

    w1, b1 = lin(ks[0], ks[1], in_dim, hidden)
    w2, b2 = lin(ks[2], ks[3], hidden, hidden)
    w3, b3 = lin(ks[4], ks[5], hidden, 2 * latent_dim)
    return (w1, b1, w2, b2, w3, b3)


def reference_bf16(x, params, latent_dim):
    # Pure-JAX reference mirroring the kernel's bf16-operand / f32-accumulate math.
    w1, b1, w2, b2, w3, b3 = params
    h = x.reshape(x.shape[0], -1).astype(jnp.bfloat16)
    h = jnp.dot(h, w1.astype(jnp.bfloat16), preferred_element_type=jnp.float32) + b1
    h = jnp.maximum(h, 0.0).astype(jnp.bfloat16)
    h = jnp.dot(h, w2.astype(jnp.bfloat16), preferred_element_type=jnp.float32) + b2
    h = jnp.maximum(h, 0.0).astype(jnp.bfloat16)
    out = jnp.dot(h, w3.astype(jnp.bfloat16), preferred_element_type=jnp.float32) + b3
    mean, logvar = out[:, :latent_dim], out[:, latent_dim:]
    return mean, jnp.exp(0.5 * logvar)


def reference_f32(x, params, latent_dim):
    # Full-precision reference of the original PyTorch module semantics.
    w1, b1, w2, b2, w3, b3 = params
    h = x.reshape(x.shape[0], -1)
    h = jnp.maximum(h @ w1 + b1, 0.0)
    h = jnp.maximum(h @ w2 + b2, 0.0)
    out = h @ w3 + b3
    mean, logvar = out[:, :latent_dim], out[:, latent_dim:]
    return mean, jnp.sqrt(jnp.exp(logvar))


if __name__ == "__main__":
    key = jax.random.PRNGKey(0)
    k_x, k_p = jax.random.split(key)

    B, F1, F2 = 8, 16, 16          # (batch, feature_dim1, feature_dim2)
    D = F1 * F2                    # flattened input dim
    H = 128                        # hidden width
    M = 16                         # latent dim (encoder_net outputs 2M)

    x = jax.random.normal(k_x, (B, F1, F2), jnp.float32)
    params = init_params(k_p, D, H, M)

    mean, std = gaussian_encoder(x, params, M)
    jax.block_until_ready((mean, std))

    assert mean.shape == (B, M) and std.shape == (B, M)

    # Strict check against a reference doing the same bf16-operand math.
    m_b, s_b = reference_bf16(x, params, M)
    assert jnp.allclose(mean, m_b, atol=2e-3, rtol=2e-3)
    assert jnp.allclose(std, s_b, atol=2e-3, rtol=2e-3)

    # Loose check against the full-f32 semantics of the original module.
    m_f, s_f = reference_f32(x, params, M)
    assert jnp.allclose(mean, m_f, atol=5e-2, rtol=5e-2)
    assert jnp.allclose(std, s_f, atol=5e-2, rtol=5e-2)

    assert bool(jnp.all(std > 0))
    print("KERNEL_OK")
</pallas_src>

<mosaic_0001>
module attributes {stable_mosaic.version = 11 : i64} {
  func.func @gaussian_encoder_kernel(%arg0: i32, %arg1: memref<8x256xbf16, #tpu.memory_space<vmem>>, %arg2: memref<256x128xbf16, #tpu.memory_space<vmem>>, %arg3: memref<1x128xf32, #tpu.memory_space<vmem>>, %arg4: memref<128x128xbf16, #tpu.memory_space<vmem>>, %arg5: memref<1x128xf32, #tpu.memory_space<vmem>>, %arg6: memref<128x256xbf16, #tpu.memory_space<vmem>>, %arg7: memref<1x256xf32, #tpu.memory_space<vmem>>, %arg8: memref<8x128xf32, #tpu.memory_space<vmem>>, %arg9: memref<8x128xf32, #tpu.memory_space<vmem>>) attributes {dimension_semantics = [#tpu.dimension_semantics<parallel>], iteration_bounds = array<i64: 1>, scalar_prefetch = 0 : i64, scratch_operands = 0 : i64, tpu.core_type = #tpu.core_type<tc>, window_params = [{transform_indices = @transform_0, window_bounds = array<i64: 8, 256>}, {pipeline_mode = #tpu.pipeline_mode<synchronous>, transform_indices = @transform_1, window_bounds = array<i64: 256, 128>}, {pipeline_mode = #tpu.pipeline_mode<synchronous>, transform_indices = @transform_2, window_bounds = array<i64: 1, 128>}, {pipeline_mode = #tpu.pipeline_mode<synchronous>, transform_indices = @transform_3, window_bounds = array<i64: 128, 128>}, {pipeline_mode = #tpu.pipeline_mode<synchronous>, transform_indices = @transform_4, window_bounds = array<i64: 1, 128>}, {pipeline_mode = #tpu.pipeline_mode<synchronous>, transform_indices = @transform_5, window_bounds = array<i64: 128, 256>}, {pipeline_mode = #tpu.pipeline_mode<synchronous>, transform_indices = @transform_6, window_bounds = array<i64: 1, 256>}, {transform_indices = @transform_7, window_bounds = array<i64: 8, 128>}, {transform_indices = @transform_8, window_bounds = array<i64: 8, 128>}]} {
    %c0 = arith.constant 0 : index
    %c0_0 = arith.constant 0 : index
    %0 = vector.load %arg1[%c0, %c0_0] : memref<8x256xbf16, #tpu.memory_space<vmem>>, vector<8x256xbf16>
    %c0_1 = arith.constant 0 : index
    %c0_2 = arith.constant 0 : index
    %1 = vector.load %arg2[%c0_1, %c0_2] : memref<256x128xbf16, #tpu.memory_space<vmem>>, vector<256x128xbf16>
    %cst = arith.constant dense<0.000000e+00> : vector<8x128xf32>
    %2 = tpu.matmul %0, %1, %cst {dimension_numbers = #tpu.dot_dimension_numbers<[1], [0], [0], [1], [0, 0, 1, 1], [], []>} : vector<8x256xbf16>, vector<256x128xbf16>, vector<8x128xf32> -> vector<8x128xf32>
    %c0_3 = arith.constant 0 : index
    %c0_4 = arith.constant 0 : index
    %3 = vector.load %arg3[%c0_3, %c0_4] : memref<1x128xf32, #tpu.memory_space<vmem>>, vector<1x128xf32>
    %4 = vector.broadcast %3 : vector<1x128xf32> to vector<8x128xf32>
    %5 = arith.addf %2, %4 : vector<8x128xf32>
    %cst_5 = arith.constant 0.000000e+00 : f32
    %6 = vector.broadcast %cst_5 : f32 to vector<8x128xf32>
    %7 = arith.maximumf %5, %6 : vector<8x128xf32>
    %8 = arith.truncf %7 : vector<8x128xf32> to vector<8x128xbf16>
    %c0_6 = arith.constant 0 : index
    %c0_7 = arith.constant 0 : index
    %9 = vector.load %arg4[%c0_6, %c0_7] : memref<128x128xbf16, #tpu.memory_space<vmem>>, vector<128x128xbf16>
    %cst_8 = arith.constant dense<0.000000e+00> : vector<8x128xf32>
    %10 = tpu.matmul %8, %9, %cst_8 {dimension_numbers = #tpu.dot_dimension_numbers<[1], [0], [0], [1], [0, 0, 1, 1], [], []>} : vector<8x128xbf16>, vector<128x128xbf16>, vector<8x128xf32> -> vector<8x128xf32>
    %c0_9 = arith.constant 0 : index
    %c0_10 = arith.constant 0 : index
    %11 = vector.load %arg5[%c0_9, %c0_10] : memref<1x128xf32, #tpu.memory_space<vmem>>, vector<1x128xf32>
    %12 = vector.broadcast %11 : vector<1x128xf32> to vector<8x128xf32>
    %13 = arith.addf %10, %12 : vector<8x128xf32>
    %cst_11 = arith.constant 0.000000e+00 : f32
    %14 = vector.broadcast %cst_11 : f32 to vector<8x128xf32>
    %15 = arith.maximumf %13, %14 : vector<8x128xf32>
    %16 = arith.truncf %15 : vector<8x128xf32> to vector<8x128xbf16>
    %c0_12 = arith.constant 0 : index
    %c0_13 = arith.constant 0 : index
    %17 = vector.load %arg6[%c0_12, %c0_13] : memref<128x256xbf16, #tpu.memory_space<vmem>>, vector<128x256xbf16>
    %cst_14 = arith.constant dense<0.000000e+00> : vector<8x256xf32>
    %18 = tpu.matmul %16, %17, %cst_14 {dimension_numbers = #tpu.dot_dimension_numbers<[1], [0], [0], [1], [0, 0, 1, 1], [], []>} : vector<8x128xbf16>, vector<128x256xbf16>, vector<8x256xf32> -> vector<8x256xf32>
    %c0_15 = arith.constant 0 : index
    %c0_16 = arith.constant 0 : index
    %19 = vector.load %arg7[%c0_15, %c0_16] : memref<1x256xf32, #tpu.memory_space<vmem>>, vector<1x256xf32>
    %20 = vector.broadcast %19 : vector<1x256xf32> to vector<8x256xf32>
    %21 = arith.addf %18, %20 : vector<8x256xf32>
    %22 = vector.extract_strided_slice %21 {offsets = [0, 0], sizes = [8, 128], strides = [1, 1]} : vector<8x256xf32> to vector<8x128xf32>
    %c0_17 = arith.constant 0 : index
    %c0_18 = arith.constant 0 : index
    %23 = vector.load %arg8[%c0_17, %c0_18] : memref<8x128xf32, #tpu.memory_space<vmem>>, vector<8x128xf32>
    tpu.vector_store %arg8[%c0_17, %c0_18], %22 {strides = array<i32>} : memref<8x128xf32, #tpu.memory_space<vmem>>, vector<8x128xf32>,
    %24 = vector.extract_strided_slice %21 {offsets = [0, 128], sizes = [8, 128], strides = [1, 1]} : vector<8x256xf32> to vector<8x128xf32>
    %cst_19 = arith.constant 5.000000e-01 : f32
    %25 = vector.broadcast %cst_19 : f32 to vector<8x128xf32>
    %26 = arith.mulf %25, %24 : vector<8x128xf32>
    %27 = math.exp %26 : vector<8x128xf32>
    %c0_20 = arith.constant 0 : index
    %c0_21 = arith.constant 0 : index
    %28 = vector.load %arg9[%c0_20, %c0_21] : memref<8x128xf32, #tpu.memory_space<vmem>>, vector<8x128xf32>
    tpu.vector_store %arg9[%c0_20, %c0_21], %27 {strides = array<i32>} : memref<8x128xf32, #tpu.memory_space<vmem>>, vector<8x128xf32>,
    return
  }
  func.func @transform_0(%arg0: i32) -> (i32, i32) {
    %c0_i32 = arith.constant 0 : i32
    %c0_i32_0 = arith.constant 0 : i32
    return %arg0, %c0_i32 : i32, i32
  }
  func.func @transform_1(%arg0: i32) -> (i32, i32) {
    %c0_i32 = arith.constant 0 : i32
    %c0_i32_0 = arith.constant 0 : i32
    %c0_i32_1 = arith.constant 0 : i32
    return %c0_i32, %c0_i32_0 : i32, i32
  }
  func.func @transform_2(%arg0: i32) -> (i32, i32) {
    %c0_i32 = arith.constant 0 : i32
    %c0_i32_0 = arith.constant 0 : i32
    %c0_i32_1 = arith.constant 0 : i32
    return %c0_i32, %c0_i32_0 : i32, i32
  }
  func.func @transform_3(%arg0: i32) -> (i32, i32) {
    %c0_i32 = arith.constant 0 : i32
    %c0_i32_0 = arith.constant 0 : i32
    %c0_i32_1 = arith.constant 0 : i32
    return %c0_i32, %c0_i32_0 : i32, i32
  }
  func.func @transform_4(%arg0: i32) -> (i32, i32) {
    %c0_i32 = arith.constant 0 : i32
    %c0_i32_0 = arith.constant 0 : i32
    %c0_i32_1 = arith.constant 0 : i32
    return %c0_i32, %c0_i32_0 : i32, i32
  }
  func.func @transform_5(%arg0: i32) -> (i32, i32) {
    %c0_i32 = arith.constant 0 : i32
    %c0_i32_0 = arith.constant 0 : i32
    %c0_i32_1 = arith.constant 0 : i32
    return %c0_i32, %c0_i32_0 : i32, i32
  }
  func.func @transform_6(%arg0: i32) -> (i32, i32) {
    %c0_i32 = arith.constant 0 : i32
    %c0_i32_0 = arith.constant 0 : i32
    %c0_i32_1 = arith.constant 0 : i32
    return %c0_i32, %c0_i32_0 : i32, i32
  }
  func.func @transform_7(%arg0: i32) -> (i32, i32) {
    %c0_i32 = arith.constant 0 : i32
    %c0_i32_0 = arith.constant 0 : i32
    return %arg0, %c0_i32 : i32, i32
  }
  func.func @transform_8(%arg0: i32) -> (i32, i32) {
    %c0_i32 = arith.constant 0 : i32
    %c0_i32_0 = arith.constant 0 : i32
    return %arg0, %c0_i32 : i32, i32
  }
}

</mosaic_0001>

<llo_original>
// kernel: tpu_custom_call.1
$region0: #{tpu_custom_call.1}
  #allocation0 [shape = 'u32[]', space=smem, size = 0x4, offset = 0x4, fixed_abs, tag = 'smem constant byte address 0x4 - core index']
  #allocation1 [shape = 'u32[144,128]{1,0:T(1,128)}', space=vmem, size = 0x12000, scoped, tag = 'internal scratch']
  %s0 = inlined_call_operand.hbm [shape: bf16[8,256], index: 0, kind: input, shape index: {}]
  %s1 = inlined_call_operand.hbm [shape: bf16[256,128], index: 1, kind: input, shape index: {}]
  %s2 = inlined_call_operand.vmem [shape: f32[1,128], index: 2, kind: input, shape index: {}]
  %s3 = inlined_call_operand.hbm [shape: bf16[128,128], index: 3, kind: input, shape index: {}]
  %s4 = inlined_call_operand.vmem [shape: f32[1,128], index: 4, kind: input, shape index: {}]
  %s5 = inlined_call_operand.hbm [shape: bf16[128,256], index: 5, kind: input, shape index: {}]
  %s6 = inlined_call_operand.vmem [shape: f32[1,256], index: 6, kind: input, shape index: {}]
  %s7 = inlined_call_operand.hbm [shape: f32[8,128], index: 7, kind: output, shape index: {0}]
  %s8 = inlined_call_operand.hbm [shape: f32[8,128], index: 8, kind: output, shape index: {1}]
  %9 = xla_tuple %s7, %s8
  %s10 = sld [smem:[#allocation0]]
  $region62: #{tpu_custom_call.1} parent=0
    _
  %s12 = ssub.s32 1, %s10
  %s13 = scalar_select 0, %s12, %s10
  $region1: #{tpu_custom_call.1} parent=0
    #allocation2 [shape = 'u8[4096]{0}', space=vmem, size = 0x1000, scoped, tag = 'input window, operand 0, single buffered']
    #allocation3 [shape = 's32[1]{0}', space=sflag, size = 0x4, scoped, tag = 'scoped memory for tpu_custom_call.1']
    #allocation4 [shape = 's32[1]{0}', space=sflag, size = 0x4, scoped, tag = 'scoped memory for tpu_custom_call.1']
    #allocation5 [shape = 'u8[65536]{0}', space=vmem, size = 0x10000, scoped, tag = 'input window, operand 1, single buffered']
    #allocation6 [shape = 's32[1]{0}', space=sflag, size = 0x4, scoped, tag = 'scoped memory for tpu_custom_call.1']
    #allocation7 [shape = 'u8[32768]{0}', space=vmem, size = 0x8000, scoped, tag = 'input window, operand 3, single buffered']
    #allocation8 [shape = 'u8[65536]{0}', space=vmem, size = 0x10000, scoped, tag = 'input window, operand 5, single buffered']
    #allocation9 [shape = 's32[1]{0}', space=sflag, size = 0x4, scoped, tag = 'scoped memory for tpu_custom_call.1']
    #allocation10 [shape = 'u8[4096]{0}', space=vmem, size = 0x1000, scoped, tag = 'output window, operand 0, single buffered']
    #allocation11 [shape = 'u8[4096]{0}', space=vmem, size = 0x1000, scoped, tag = 'output window, operand 1, single buffered']
    #allocation12 [shape = 's32[1]{0}', space=sflag, size = 0x4, scoped, tag = 'scoped memory for tpu_custom_call.1']
    %14 = vsyncpa [#allocation3], 0
    %15 = vsyncpa [#allocation6], 0
    %16 = vsyncpa [#allocation9], 0
    %17 = vsyncpa [#allocation4], 0
    %18 = vsyncpa [#allocation12], 0
    // Predicated region
    $region2: #{tpu_custom_call.1} parent=1 // pred_check
      _
    $region3: #{tpu_custom_call.1} parent=1 // pred_check_branch
      %20 = sbr.rel (0) target = $region5
    $region4: #{tpu_custom_call.1} parent=1 // pred_region
      %s22 = ssub.s32 128, 128
      %23 = vsyncadd [#allocation3], %s22
      %s25 = sshll.u32 [#allocation2], 4
      %s26 = int_to_ptr.vmem [resolvable:$true] %s25
      %28 = dma.hbm_to_vmem [thread:$0]  %s0, 128, %s26, [#allocation3]
    $region5: #{tpu_custom_call.1} parent=1 // pred_fallthru
      _
    // Predicated region
    $region6: #{tpu_custom_call.1} parent=1 // pred_check
      _
    $region7: #{tpu_custom_call.1} parent=1 // pred_check_branch
      %30 = sbr.rel (0) target = $region9
    $region8: #{tpu_custom_call.1} parent=1 // pred_region
      %s32 = ssub.s32 2048, 2048
      %33 = vsyncadd [#allocation6], %s32
      %s34 = sshll.u32 [#allocation5], 4
      %s35 = int_to_ptr.vmem [resolvable:$true] %s34
      %40 = dma.hbm_to_vmem [thread:$0]  %s1, 2048, %s35, [#allocation6], 64, 64, 4
    $region9: #{tpu_custom_call.1} parent=1 // pred_fallthru
      _
    // Predicated region
    $region10: #{tpu_custom_call.1} parent=1 // pred_check
      _
    $region11: #{tpu_custom_call.1} parent=1 // pred_check_branch
      %42 = sbr.rel (0) target = $region13
    $region12: #{tpu_custom_call.1} parent=1 // pred_region
      _
    $region13: #{tpu_custom_call.1} parent=1 // pred_fallthru
      _
    // Predicated region
    $region14: #{tpu_custom_call.1} parent=1 // pred_check
      _
    $region15: #{tpu_custom_call.1} parent=1 // pred_check_branch
      %44 = sbr.rel (0) target = $region17
    $region16: #{tpu_custom_call.1} parent=1 // pred_region
      %s46 = ssub.s32 1024, 1024
      %47 = vsyncadd [#allocation6], %s46
      %s48 = sshll.u32 [#allocation7], 4
      %s49 = int_to_ptr.vmem [resolvable:$true] %s48
      %54 = dma.hbm_to_vmem [thread:$0]  %s3, 1024, %s49, [#allocation6], 64, 64, 4
    $region17: #{tpu_custom_call.1} parent=1 // pred_fallthru
      _
    // Predicated region
    $region18: #{tpu_custom_call.1} parent=1 // pred_check
      _
    $region19: #{tpu_custom_call.1} parent=1 // pred_check_branch
      %56 = sbr.rel (0) target = $region21
    $region20: #{tpu_custom_call.1} parent=1 // pred_region
      _
    $region21: #{tpu_custom_call.1} parent=1 // pred_fallthru
      _
    // Predicated region
    $region22: #{tpu_custom_call.1} parent=1 // pred_check
      _
    $region23: #{tpu_custom_call.1} parent=1 // pred_check_branch
      %58 = sbr.rel (0) target = $region25
    $region24: #{tpu_custom_call.1} parent=1 // pred_region
      %s60 = ssub.s32 2048, 2048
      %61 = vsyncadd [#allocation9], %s60
      %s62 = sshll.u32 [#allocation8], 4
      %s63 = int_to_ptr.vmem [resolvable:$true] %s62
      %68 = dma.hbm_to_vmem [thread:$0]  %s5, 2048, %s63, [#allocation9], 128, 128, 8
    $region25: #{tpu_custom_call.1} parent=1 // pred_fallthru
      _
    // Predicated region
    $region26: #{tpu_custom_call.1} parent=1 // pred_check
      _
    $region27: #{tpu_custom_call.1} parent=1 // pred_check_branch
      %70 = sbr.rel (0) target = $region29
    $region28: #{tpu_custom_call.1} parent=1 // pred_region
      _
    $region29: #{tpu_custom_call.1} parent=1 // pred_fallthru
      _
    // Predicated region
    $region30: #{tpu_custom_call.1} parent=1 // pred_check
      _
    $region31: #{tpu_custom_call.1} parent=1 // pred_check_branch
      %72 = sbr.rel (0) target = $region33
    $region32: #{tpu_custom_call.1} parent=1 // pred_region
      %73 = dma.done [#allocation3], 128
    $region33: #{tpu_custom_call.1} parent=1 // pred_fallthru
      _
    // Predicated region
    $region34: #{tpu_custom_call.1} parent=1 // pred_check
      _
    $region35: #{tpu_custom_call.1} parent=1 // pred_check_branch
      %75 = sbr.rel (0) target = $region37
    $region36: #{tpu_custom_call.1} parent=1 // pred_region
      %76 = dma.done [#allocation6], 2048
    $region37: #{tpu_custom_call.1} parent=1 // pred_fallthru
      _
    // Predicated region
    $region38: #{tpu_custom_call.1} parent=1 // pred_check
      _
    $region39: #{tpu_custom_call.1} parent=1 // pred_check_branch
      %78 = sbr.rel (0) target = $region41
    $region40: #{tpu_custom_call.1} parent=1 // pred_region
      %79 = dma.done [#allocation6], 1024
    $region41: #{tpu_custom_call.1} parent=1 // pred_fallthru
      _
    // Predicated region
    $region42: #{tpu_custom_call.1} parent=1 // pred_check
      _
    $region43: #{tpu_custom_call.1} parent=1 // pred_check_branch
      %81 = sbr.rel (0) target = $region45
    $region44: #{tpu_custom_call.1} parent=1 // pred_region
      %82 = dma.done [#allocation9], 2048
    $region45: #{tpu_custom_call.1} parent=1 // pred_fallthru
      _
    %v84 = vld [vmem:[#allocation2] sm:$0xff]
    %v85 = vld [vmem:[#allocation5] sm:$0xf]
    %v86 = vld [vmem:[#allocation5 + $0x4] sm:$0xf]
    %v87 = vld [vmem:[#allocation5 + $0x8] sm:$0xf]
    %v88 = vld [vmem:[#allocation5 + $0xc] sm:$0xf]
    %v89 = vld [vmem:[#allocation5 + $0x10] sm:$0xf]
    %v90 = vld [vmem:[#allocation5 + $0x14] sm:$0xf]
    %v91 = vld [vmem:[#allocation5 + $0x18] sm:$0xf]
    %v92 = vld [vmem:[#allocation5 + $0x1c] sm:$0xf]
    %v93 = vld [vmem:[#allocation5 + $0x20] sm:$0xf]
    %v94 = vld [vmem:[#allocation5 + $0x24] sm:$0xf]
    %v95 = vld [vmem:[#allocation5 + $0x28] sm:$0xf]
    %v96 = vld [vmem:[#allocation5 + $0x2c] sm:$0xf]
    %v97 = vld [vmem:[#allocation5 + $0x30] sm:$0xf]
    %v98 = vld [vmem:[#allocation5 + $0x34] sm:$0xf]
    %v99 = vld [vmem:[#allocation5 + $0x38] sm:$0xf]
    %v100 = vld [vmem:[#allocation5 + $0x3c] sm:$0xf]
    %v101 = vld [vmem:[#allocation5 + $0x40] sm:$0xf]
    %v102 = vld [vmem:[#allocation5 + $0x44] sm:$0xf]
    %v103 = vld [vmem:[#allocation5 + $0x48] sm:$0xf]
    %v104 = vld [vmem:[#allocation5 + $0x4c] sm:$0xf]
    %v105 = vld [vmem:[#allocation5 + $0x50] sm:$0xf]
    %v106 = vld [vmem:[#allocation5 + $0x54] sm:$0xf]
    %v107 = vld [vmem:[#allocation5 + $0x58] sm:$0xf]
    %v108 = vld [vmem:[#allocation5 + $0x5c] sm:$0xf]
    %v109 = vld [vmem:[#allocation5 + $0x60] sm:$0xf]
    %v110 = vld [vmem:[#allocation5 + $0x64] sm:$0xf]
    %v111 = vld [vmem:[#allocation5 + $0x68] sm:$0xf]
    %v112 = vld [vmem:[#allocation5 + $0x6c] sm:$0xf]
    %v113 = vld [vmem:[#allocation5 + $0x70] sm:$0xf]
    %v114 = vld [vmem:[#allocation5 + $0x74] sm:$0xf]
    %v115 = vld [vmem:[#allocation5 + $0x78] sm:$0xf]
    %v116 = vld [vmem:[#allocation5 + $0x7c] sm:$0xf]
    %v117 = vld [vmem:[%s2] sm:$0x1]
    %v119 = vlaneseq
    %v120 = vshrl.u32 %v119, 7
    %v121 = vsub.s32 0, %v120
    %v122 = vrot.slane %v117, %v121
    %v125 = vunpack.c.l.b16 %v84
    %v126 = vunpack.c.h.b16 %v84
    %v127 = vpack.c.b16 %v125, %v125
    %v128 = vpack.c.b16 %v126, %v126
    %v163 = vunpack.c.l.b16 %v85
    %v164 = vunpack.c.l.b16 %v86
    %v165 = vunpack.c.l.b16 %v87
    %v166 = vunpack.c.l.b16 %v88
    %v167 = vunpack.c.l.b16 %v89
    %v168 = vunpack.c.l.b16 %v90
    %v169 = vunpack.c.l.b16 %v91
    %v170 = vunpack.c.l.b16 %v92
    %v171 = vunpack.c.l.b16 %v93
    %v172 = vunpack.c.l.b16 %v94
    %v173 = vunpack.c.l.b16 %v95
    %v174 = vunpack.c.l.b16 %v96
    %v175 = vunpack.c.l.b16 %v97
    %v176 = vunpack.c.l.b16 %v98
    %v177 = vunpack.c.l.b16 %v99
    %v178 = vunpack.c.l.b16 %v100
    %v179 = vunpack.c.l.b16 %v101
    %v180 = vunpack.c.l.b16 %v102
    %v181 = vunpack.c.l.b16 %v103
    %v182 = vunpack.c.l.b16 %v104
    %v183 = vunpack.c.l.b16 %v105
    %v184 = vunpack.c.l.b16 %v106
    %v185 = vunpack.c.l.b16 %v107
    %v186 = vunpack.c.l.b16 %v108
    %v187 = vunpack.c.l.b16 %v109
    %v188 = vunpack.c.l.b16 %v110
    %v189 = vunpack.c.l.b16 %v111
    %v190 = vunpack.c.l.b16 %v112
    %v191 = vunpack.c.l.b16 %v113
    %v192 = vunpack.c.l.b16 %v114
    %v193 = vunpack.c.l.b16 %v115
    %v194 = vunpack.c.l.b16 %v116
    %v195 = vpack.c.b16 %v164, %v163
    %v196 = vpack.c.b16 %v166, %v165
    %v197 = vpack.c.b16 %v168, %v167
    %v198 = vpack.c.b16 %v170, %v169
    %v199 = vpack.c.b16 %v172, %v171
    %v200 = vpack.c.b16 %v174, %v173
    %v201 = vpack.c.b16 %v176, %v175
    %v202 = vpack.c.b16 %v178, %v177
    %v203 = vpack.c.b16 %v180, %v179
    %v204 = vpack.c.b16 %v182, %v181
    %v205 = vpack.c.b16 %v184, %v183
    %v206 = vpack.c.b16 %v186, %v185
    %v207 = vpack.c.b16 %v188, %v187
    %v208 = vpack.c.b16 %v190, %v189
    %v209 = vpack.c.b16 %v192, %v191
    %v210 = vpack.c.b16 %v194, %v193
    %227 = vmatprep.subr.bf16.mxu0 0
    %228 = vmatpush1.bf16.msra.mxu0 %v195
    %229 = vmatprep.subr.bf16.mxu0 0
    %230 = vmatpush1.bf16.msra.mxu0 %v196
    %231 = vmatprep.subr.bf16.mxu0 0
    %232 = vmatpush1.bf16.msra.mxu0 %v197
    %233 = vmatprep.subr.bf16.mxu0 0
    %234 = vmatpush1.bf16.msra.mxu0 %v198
    %235 = vmatprep.subr.bf16.mxu0 0
    %236 = vmatpush1.bf16.msra.mxu0 %v199
    %237 = vmatprep.subr.bf16.mxu0 0
    %238 = vmatpush1.bf16.msra.mxu0 %v200
    %239 = vmatprep.subr.bf16.mxu0 0
    %240 = vmatpush1.bf16.msra.mxu0 %v201
    %241 = vmatprep.subr.bf16.mxu0 0
    %242 = vmatpush1.bf16.msra.mxu0 %v202
    %243 = vmatprep.subr.bf16.mxu0 0
    %244 = vmatpush1.bf16.msra.mxu0 %v203
    %245 = vmatprep.subr.bf16.mxu0 0
    %246 = vmatpush1.bf16.msra.mxu0 %v204
    %247 = vmatprep.subr.bf16.mxu0 0
    %248 = vmatpush1.bf16.msra.mxu0 %v205
    %249 = vmatprep.subr.bf16.mxu0 0
    %250 = vmatpush1.bf16.msra.mxu0 %v206
    %251 = vmatprep.subr.bf16.mxu0 0
    %252 = vmatpush1.bf16.msra.mxu0 %v207
    %253 = vmatprep.subr.bf16.mxu0 0
    %254 = vmatpush1.bf16.msra.mxu0 %v208
    %255 = vmatprep.subr.bf16.mxu0 0
    %256 = vmatpush1.bf16.msra.mxu0 %v209
    %257 = vmatprep.subr.bf16.mxu0 0
    %258 = vmatpush1.bf16.msra.mxu0 %v210
    %259 = vmatprep.mubr.bf16.mxu0 %v128
    %260 = vmatmul.mubr.bf16.gmra.mrb[0].mxu0 %v127
    %v261 = vpop.f32.mrb[0].mxu0
    %v262 = vadd.f32 %v122, %v261
    %v263 = vpop.f32.mrb[0].mxu0
    %v264 = vpop.f32.mrb[0].mxu0
    %v265 = vpop.f32.mrb[0].mxu0
    %266 = vdwg.mxu0
    %v267 = vmax.f32 %v262, 0.0
    %v268 = vpack.c.bf16 %v267, %v267
    %v269 = vld [vmem:[#allocation7] sm:$0xf]
    %v270 = vld [vmem:[#allocation7 + $0x4] sm:$0xf]
    %v271 = vld [vmem:[#allocation7 + $0x8] sm:$0xf]
    %v272 = vld [vmem:[#allocation7 + $0xc] sm:$0xf]
    %v273 = vld [vmem:[#allocation7 + $0x10] sm:$0xf]
    %v274 = vld [vmem:[#allocation7 + $0x14] sm:$0xf]
    %v275 = vld [vmem:[#allocation7 + $0x18] sm:$0xf]
    %v276 = vld [vmem:[#allocation7 + $0x1c] sm:$0xf]
    %v277 = vld [vmem:[#allocation7 + $0x20] sm:$0xf]
    %v278 = vld [vmem:[#allocation7 + $0x24] sm:$0xf]
    %v279 = vld [vmem:[#allocation7 + $0x28] sm:$0xf]
    %v280 = vld [vmem:[#allocation7 + $0x2c] sm:$0xf]
    %v281 = vld [vmem:[#allocation7 + $0x30] sm:$0xf]
    %v282 = vld [vmem:[#allocation7 + $0x34] sm:$0xf]
    %v283 = vld [vmem:[#allocation7 + $0x38] sm:$0xf]
    %v284 = vld [vmem:[#allocation7 + $0x3c] sm:$0xf]
    %v285 = vld [vmem:[%s4] sm:$0x1]
    %v287 = vlaneseq
    %v288 = vshrl.u32 %v287, 7
    %v289 = vsub.s32 0, %v288
    %v290 = vrot.slane %v285, %v289
    %v308 = vunpack.c.l.b16 %v269
    %v309 = vunpack.c.l.b16 %v270
    %v310 = vunpack.c.l.b16 %v271
    %v311 = vunpack.c.l.b16 %v272
    %v312 = vunpack.c.l.b16 %v273
    %v313 = vunpack.c.l.b16 %v274
    %v314 = vunpack.c.l.b16 %v275
    %v315 = vunpack.c.l.b16 %v276
    %v316 = vunpack.c.l.b16 %v277
    %v317 = vunpack.c.l.b16 %v278
    %v318 = vunpack.c.l.b16 %v279
    %v319 = vunpack.c.l.b16 %v280
    %v320 = vunpack.c.l.b16 %v281
    %v321 = vunpack.c.l.b16 %v282
    %v322 = vunpack.c.l.b16 %v283
    %v323 = vunpack.c.l.b16 %v284
    %v324 = vpack.c.b16 %v309, %v308
    %v325 = vpack.c.b16 %v311, %v310
    %v326 = vpack.c.b16 %v313, %v312
    %v327 = vpack.c.b16 %v315, %v314
    %v328 = vpack.c.b16 %v317, %v316
    %v329 = vpack.c.b16 %v319, %v318
    %v330 = vpack.c.b16 %v321, %v320
    %v331 = vpack.c.b16 %v323, %v322
    %340 = vmatprep.subr.bf16.mxu0 0
    %341 = vmatpush1.bf16.msra.mxu0 %v324
    %342 = vmatprep.subr.bf16.mxu0 0
    %343 = vmatpush1.bf16.msra.mxu0 %v325
    %344 = vmatprep.subr.bf16.mxu0 0
    %345 = vmatpush1.bf16.msra.mxu0 %v326
    %346 = vmatprep.subr.bf16.mxu0 0
    %347 = vmatpush1.bf16.msra.mxu0 %v327
    %348 = vmatprep.subr.bf16.mxu0 0
    %349 = vmatpush1.bf16.msra.mxu0 %v328
    %350 = vmatprep.subr.bf16.mxu0 0
    %351 = vmatpush1.bf16.msra.mxu0 %v329
    %352 = vmatprep.subr.bf16.mxu0 0
    %353 = vmatpush1.bf16.msra.mxu0 %v330
    %354 = vmatprep.subr.bf16.mxu0 0
    %355 = vmatpush1.bf16.msra.mxu0 %v331
    %356 = vmatprep.subr.bf16.mxu0 0
    %357 = vmatpush1.bf16.msra.mxu0 0
    %358 = vmatprep.subr.bf16.mxu0 0
    %359 = vmatpush1.bf16.msra.mxu0 0
    %360 = vmatprep.subr.bf16.mxu0 0
    %361 = vmatpush1.bf16.msra.mxu0 0
    %362 = vmatprep.subr.bf16.mxu0 0
    %363 = vmatpush1.bf16.msra.mxu0 0
    %364 = vmatprep.subr.bf16.mxu0 0
    %365 = vmatpush1.bf16.msra.mxu0 0
    %366 = vmatprep.subr.bf16.mxu0 0
    %367 = vmatpush1.bf16.msra.mxu0 0
    %368 = vmatprep.subr.bf16.mxu0 0
    %369 = vmatpush1.bf16.msra.mxu0 0
    %370 = vmatprep.subr.bf16.mxu0 0
    %371 = vmatpush1.bf16.msra.mxu0 0
    %372 = vmatprep.mubr.bf16.mxu0 0
    %373 = vmatmul.mubr.bf16.gmra.mrb[0].mxu0 %v268
    %v374 = vpop.f32.mrb[0].mxu0
    %v375 = vadd.f32 %v290, %v374
    %v376 = vpop.f32.mrb[0].mxu0
    %v377 = vpop.f32.mrb[0].mxu0
    %v378 = vpop.f32.mrb[0].mxu0
    %379 = vdwg.mxu0
    %v380 = vmax.f32 %v375, 0.0
    %v381 = vpack.c.bf16 %v380, %v380
    %v382 = vld [vmem:[#allocation8] sm:$0xff]
    %v383 = vld [vmem:[#allocation8 + $0x8] sm:$0xff]
    %v384 = vld [vmem:[#allocation8 + $0x10] sm:$0xff]
    %v385 = vld [vmem:[#allocation8 + $0x18] sm:$0xff]
    %v386 = vld [vmem:[#allocation8 + $0x20] sm:$0xff]
    %v387 = vld [vmem:[#allocation8 + $0x28] sm:$0xff]
    %v388 = vld [vmem:[#allocation8 + $0x30] sm:$0xff]
    %v389 = vld [vmem:[#allocation8 + $0x38] sm:$0xff]
    %v390 = vld [vmem:[#allocation8 + $0x40] sm:$0xff]
    %v391 = vld [vmem:[#allocation8 + $0x48] sm:$0xff]
    %v392 = vld [vmem:[#allocation8 + $0x50] sm:$0xff]
    %v393 = vld [vmem:[#allocation8 + $0x58] sm:$0xff]
    %v394 = vld [vmem:[#allocation8 + $0x60] sm:$0xff]
    %v395 = vld [vmem:[#allocation8 + $0x68] sm:$0xff]
    %v396 = vld [vmem:[#allocation8 + $0x70] sm:$0xff]
    %v397 = vld [vmem:[#allocation8 + $0x78] sm:$0xff]
    %v398 = vld [vmem:[%s6] sm:$0x3]
    %v400 = vlaneseq
    %v401 = vshrl.u32 %v400, 7
    %v402 = vsub.s32 0, %v401
    %v403 = vrot.slane %v398, %v402
    %v404 = vlaneseq
    %v405 = vshrl.u32 %v404, 7
    %v406 = vsub.s32 1, %v405
    %v407 = vrot.slane %v398, %v406
    %v426 = vunpack.c.l.b16 %v382
    %v427 = vunpack.c.h.b16 %v382
    %v428 = vunpack.c.l.b16 %v383
    %v429 = vunpack.c.h.b16 %v383
    %v430 = vunpack.c.l.b16 %v384
    %v431 = vunpack.c.h.b16 %v384
    %v432 = vunpack.c.l.b16 %v385
    %v433 = vunpack.c.h.b16 %v385
    %v434 = vunpack.c.l.b16 %v386
    %v435 = vunpack.c.h.b16 %v386
    %v436 = vunpack.c.l.b16 %v387
    %v437 = vunpack.c.h.b16 %v387
    %v438 = vunpack.c.l.b16 %v388
    %v439 = vunpack.c.h.b16 %v388
    %v440 = vunpack.c.l.b16 %v389
    %v441 = vunpack.c.h.b16 %v389
    %v442 = vunpack.c.l.b16 %v390
    %v443 = vunpack.c.h.b16 %v390
    %v444 = vunpack.c.l.b16 %v391
    %v445 = vunpack.c.h.b16 %v391
    %v446 = vunpack.c.l.b16 %v392
    %v447 = vunpack.c.h.b16 %v392
    %v448 = vunpack.c.l.b16 %v393
    %v449 = vunpack.c.h.b16 %v393
    %v450 = vunpack.c.l.b16 %v394
    %v451 = vunpack.c.h.b16 %v394
    %v452 = vunpack.c.l.b16 %v395
    %v453 = vunpack.c.h.b16 %v395
    %v454 = vunpack.c.l.b16 %v396
    %v455 = vunpack.c.h.b16 %v396
    %v456 = vunpack.c.l.b16 %v397
    %v457 = vunpack.c.h.b16 %v397
    %v458 = vpack.c.b16 %v428, %v426
    %v459 = vpack.c.b16 %v429, %v427
    %v460 = vpack.c.b16 %v432, %v430
    %v461 = vpack.c.b16 %v433, %v431
    %v462 = vpack.c.b16 %v436, %v434
    %v463 = vpack.c.b16 %v437, %v435
    %v464 = vpack.c.b16 %v440, %v438
    %v465 = vpack.c.b16 %v441, %v439
    %v466 = vpack.c.b16 %v444, %v442
    %v467 = vpack.c.b16 %v445, %v443
    %v468 = vpack.c.b16 %v448, %v446
    %v469 = vpack.c.b16 %v449, %v447
    %v470 = vpack.c.b16 %v452, %v450
    %v471 = vpack.c.b16 %v453, %v451
    %v472 = vpack.c.b16 %v456, %v454
    %v473 = vpack.c.b16 %v457, %v455
    %490 = vmatprep.subr.bf16.mxu0 %v459
    %491 = vmatpush1.bf16.msra.mxu0 %v458
    %492 = vmatprep.subr.bf16.mxu0 %v461
    %493 = vmatpush1.bf16.msra.mxu0 %v460
    %494 = vmatprep.subr.bf16.mxu0 %v463
    %495 = vmatpush1.bf16.msra.mxu0 %v462
    %496 = vmatprep.subr.bf16.mxu0 %v465
    %497 = vmatpush1.bf16.msra.mxu0 %v464
    %498 = vmatprep.subr.bf16.mxu0 %v467
    %499 = vmatpush1.bf16.msra.mxu0 %v466
    %500 = vmatprep.subr.bf16.mxu0 %v469
    %501 = vmatpush1.bf16.msra.mxu0 %v468
    %502 = vmatprep.subr.bf16.mxu0 %v471
    %503 = vmatpush1.bf16.msra.mxu0 %v470
    %504 = vmatprep.subr.bf16.mxu0 %v473
    %505 = vmatpush1.bf16.msra.mxu0 %v472
    %506 = vmatprep.subr.bf16.mxu0 0
    %507 = vmatpush1.bf16.msra.mxu0 0
    %508 = vmatprep.subr.bf16.mxu0 0
    %509 = vmatpush1.bf16.msra.mxu0 0
    %510 = vmatprep.subr.bf16.mxu0 0
    %511 = vmatpush1.bf16.msra.mxu0 0
    %512 = vmatprep.subr.bf16.mxu0 0
    %513 = vmatpush1.bf16.msra.mxu0 0
    %514 = vmatprep.subr.bf16.mxu0 0
    %515 = vmatpush1.bf16.msra.mxu0 0
    %516 = vmatprep.subr.bf16.mxu0 0
    %517 = vmatpush1.bf16.msra.mxu0 0
    %518 = vmatprep.subr.bf16.mxu0 0
    %519 = vmatpush1.bf16.msra.mxu0 0
    %520 = vmatprep.subr.bf16.mxu0 0
    %521 = vmatpush1.bf16.msra.mxu0 0
    %522 = vmatprep.mubr.bf16.mxu0 0
    %523 = vmatmul.mubr.bf16.gmra.mrb[0].mxu0 %v381
    %v524 = vpop.f32.mrb[0].mxu0
    %v525 = vadd.f32 %v403, %v524
    %v526 = vpop.f32.mrb[0].mxu0
    %v527 = vadd.f32 %v407, %v526
    %v528 = vpop.f32.mrb[0].mxu0
    %v529 = vpop.f32.mrb[0].mxu0
    %530 = vdwg.mxu0
    %531 = vst [vmem:[#allocation10] sm:$0xff] %v525
    %v532 = vmul.f32 %v527, 0.5
    %v533 = vmul.f32 %v532, 1.442695
    %v534 = vpow.pop %v533
    %535 = vst [vmem:[#allocation11] sm:$0xff] %v534
    // Predicated region
    $region46: #{tpu_custom_call.1} parent=1 // pred_check
      _
    $region47: #{tpu_custom_call.1} parent=1 // pred_check_branch
      %537 = sbr.rel (0) target = $region49
    $region48: #{tpu_custom_call.1} parent=1 // pred_region
      %s539 = ssub.s32 128, 128
      %540 = vsyncadd [#allocation4], %s539
      %s542 = sshll.u32 [#allocation10], 4
      %s543 = int_to_ptr.vmem [resolvable:$true] %s542
      %545 = dma.vmem_to_hbm [thread:$0]  %s543, 128, %s7, [#allocation4]
    $region49: #{tpu_custom_call.1} parent=1 // pred_fallthru
      _
    // Predicated region
    $region50: #{tpu_custom_call.1} parent=1 // pred_check
      _
    $region51: #{tpu_custom_call.1} parent=1 // pred_check_branch
      %547 = sbr.rel (0) target = $region53
    $region52: #{tpu_custom_call.1} parent=1 // pred_region
      %s549 = ssub.s32 128, 128
      %550 = vsyncadd [#allocation12], %s549
      %s552 = sshll.u32 [#allocation11], 4
      %s553 = int_to_ptr.vmem [resolvable:$true] %s552
      %555 = dma.vmem_to_hbm [thread:$0]  %s553, 128, %s8, [#allocation12]
    $region53: #{tpu_custom_call.1} parent=1 // pred_fallthru
      _
    // Predicated region
    $region54: #{tpu_custom_call.1} parent=1 // pred_check
      _
    $region55: #{tpu_custom_call.1} parent=1 // pred_check_branch
      %557 = sbr.rel (0) target = $region57
    $region56: #{tpu_custom_call.1} parent=1 // pred_region
      %558 = dma.done [#allocation4], 128
    $region57: #{tpu_custom_call.1} parent=1 // pred_fallthru
      _
    // Predicated region
    $region58: #{tpu_custom_call.1} parent=1 // pred_check
      _
    $region59: #{tpu_custom_call.1} parent=1 // pred_check_branch
      %560 = sbr.rel (0) target = $region61
    $region60: #{tpu_custom_call.1} parent=1 // pred_region
      %561 = dma.done [#allocation12], 128
    $region61: #{tpu_custom_call.1} parent=1 // pred_fallthru
      _
    %562 = vsyncpa [#allocation3], 1
    %563 = vsyncpa [#allocation6], 1
    %564 = vsyncpa [#allocation9], 1
    %565 = vsyncpa [#allocation4], 1
    %566 = vsyncpa [#allocation12], 1

</llo_original>
